<compile_context>
chip_gen: v7x
topology: tpu7x:2x2x1
jax: 0.10.0
libtpu: 0.0.40
codegen_flags: <defaults>
</compile_context>

<pallas_src>
import functools
import math

import jax
import jax.numpy as jnp
from jax import lax
from jax.experimental import pallas as pl
from jax.experimental.pallas import tpu as pltpu


def patch_embed_kernel(p_ref, w_ref, gamma_ref, beta_ref, o_ref, *,
                       tb, n_pad, n_real, g_pad, cg):
    """One grid step: project TB*Np patches and apply per-batch GroupNorm.

    p_ref:     [TB*Np, Kp]  bf16 patches (TB batch elements folded into M)
    w_ref:     [Kp, Ep]     bf16 projection weight (grid-invariant)
    gamma_ref: [1, Ep]      f32 GroupNorm scale (zero in pad channels)
    beta_ref:  [1, Ep]      f32 GroupNorm shift (zero in pad channels)
    o_ref:     [TB*Np, Ep]  bf16 output
    """
    ep = g_pad * cg

    # Single MXU matmul over the folded (batch x patch) M dimension, f32 accumulation.
    y = jnp.dot(p_ref[...], w_ref[...], preferred_element_type=jnp.float32)  # [TB*Np, Ep]
    # Free reshape: n_pad % 8 == 0 and ep % 128 == 0 (guaranteed by the wrapper).
    y3 = y.reshape(tb, n_pad, ep)                                            # [TB, Np, Ep]

    # Per-batch, per-channel sums. Pad rows of the patches are zero, so they add 0.
    ch_sum = jnp.sum(y3, axis=1)                                             # [TB, Ep]
    ch_sq = jnp.sum(y3 * y3, axis=1)                                         # [TB, Ep]

    # Group stats: one reshape + one reduce (replaces the per-group mask loop).
    cnt = jnp.float32(n_real * cg)
    g_sum = jnp.sum(ch_sum.reshape(tb, g_pad, cg), axis=-1)                  # [TB, Gp]
    g_sq = jnp.sum(ch_sq.reshape(tb, g_pad, cg), axis=-1)                    # [TB, Gp]
    mean = g_sum / cnt
    # NOTE: E[x^2]-E[x]^2 in f32, clamped at 0; fine for post-conv activations.
    var = jnp.maximum(g_sq / cnt - mean * mean, 0.0)
    inv = lax.rsqrt(var + jnp.float32(1e-5))

    mean_c = jnp.broadcast_to(mean[:, :, None], (tb, g_pad, cg)).reshape(tb, ep)
    inv_c = jnp.broadcast_to(inv[:, :, None], (tb, g_pad, cg)).reshape(tb, ep)

    # Fused affine: one multiply-add over the big [TB, Np, Ep] tile.
    # Pad channels: gamma=beta=0 -> scale=shift=0 -> output 0 (dropped in wrapper).
    scale = inv_c * gamma_ref[...]                                           # [TB, Ep]
    shift = beta_ref[...] - mean_c * scale                                   # [TB, Ep]
    out = y3 * scale[:, None, :] + shift[:, None, :]                         # [TB, Np, Ep]

    # TODO(synk): Dropout is identity in eval mode; training-mode dropout would need
    # pltpu.prng_seed / pltpu.prng_random_bits.
    o_ref[...] = out.reshape(tb * n_pad, ep).astype(o_ref.dtype)


def _round_up(x, m):
    return ((x + m - 1) // m) * m


def _vmem_capacity_bytes():
    """Best-effort VMEM capacity query (falls back to the v7x-safe 64 MiB)."""
    try:
        info = pltpu.get_tpu_info()
        cap = getattr(info, "vmem_capacity_bytes", None)
        if cap:
            return int(cap)
    except Exception:
        pass
    return 64 * 1024 * 1024


def _pick_batch_tile(b, n_pad, kp, ep, budget):
    """Largest divisor of B (capped at B//2 so the grid keeps >=2 steps for megacore)
    whose per-step resident set fits the VMEM tile budget."""
    cap = max(1, b // 2)
    best = 1
    for tb in range(1, cap + 1):
        if b % tb:
            continue
        # bf16 patches (x2 buffers) + bf16 out (x2 buffers) + f32 y & out temps
        # + double-buffered bf16 weight.
        per_step = tb * n_pad * (4 * kp + 4 * ep + 8 * ep) + 4 * kp * ep
        if per_step <= budget:
            best = tb
    return best


def patch_embed(x, weight, gamma, beta, patch_size, num_groups,
                out_dtype=jnp.bfloat16):
    """x: [B, C, H, W] (NCHW, like PyTorch). Returns [B, E, H/P, W/P] in out_dtype."""
    B, C, H, W = x.shape
    E = weight.shape[0]
    P = patch_size
    assert H % P == 0 and W % P == 0 and E % num_groups == 0
    Hp, Wp = H // P, W // P
    N = Hp * Wp
    K = C * P * P
    G = num_groups
    Cg = E // G

    # Padded dims: Kp, Ep lane-dense (mult of 128); Ep padded in whole groups;
    # Np sublane-aligned (mult of 8) so the in-kernel reshape is free.
    Kp = _round_up(K, 128)
    group_lane = (Cg * 128) // math.gcd(Cg, 128)          # lcm(Cg, 128)
    Ep = E if (E % 128 == 0) else _round_up(E, group_lane)
    Np = _round_up(N, 8)
    Gp = Ep // Cg

    # Patchify: the strided conv is exactly a matmul over non-overlapping patches.
    # (NCHW in/out is the module contract, so this transpose is required glue.)
    patches = x.reshape(B, C, Hp, P, Wp, P).transpose(0, 2, 4, 1, 3, 5).reshape(B, N, K)
    # bf16 matmul operands: halves input DMA bytes, native MXU rate; stats stay f32.
    patches = patches.astype(jnp.bfloat16)
    patches = jnp.pad(patches, ((0, 0), (0, Np - N), (0, Kp - K)))
    patches = patches.reshape(B * Np, Kp)

    w2d = weight.reshape(E, K).T.astype(jnp.bfloat16)                        # [K, E]
    w2d = jnp.pad(w2d, ((0, Kp - K), (0, Ep - E)))                           # [Kp, Ep]

    gamma2d = jnp.pad(gamma.reshape(1, E).astype(jnp.float32), ((0, 0), (0, Ep - E)))
    beta2d = jnp.pad(beta.reshape(1, E).astype(jnp.float32), ((0, 0), (0, Ep - E)))

    # Generation-aware VMEM limits / tile budget (v7x: 64 MiB physical; v5e/v6e: 128 MiB).
    cap = _vmem_capacity_bytes()
    if cap >= 100 * 1024 * 1024:
        vmem_limit = 96 * 1024 * 1024
        budget = 40 * 1024 * 1024
    else:
        vmem_limit = 48 * 1024 * 1024
        budget = 20 * 1024 * 1024

    TB = _pick_batch_tile(B, Np, Kp, Ep, budget)
    grid = (B // TB,)

    kernel = functools.partial(patch_embed_kernel, tb=TB, n_pad=Np, n_real=N,
                               g_pad=Gp, cg=Cg)

    out = pl.pallas_call(
        kernel,
        out_shape=jax.ShapeDtypeStruct((B * Np, Ep), out_dtype),
        grid_spec=pltpu.PrefetchScalarGridSpec(
            num_scalar_prefetch=0,
            grid=grid,
            in_specs=[
                pl.BlockSpec((TB * Np, Kp), lambda b: (b, 0)),
                # Grid-invariant weight / affine params (constant index_map).
                pl.BlockSpec((Kp, Ep), lambda b: (0, 0)),
                pl.BlockSpec((1, Ep), lambda b: (0, 0)),
                pl.BlockSpec((1, Ep), lambda b: (0, 0)),
            ],
            out_specs=pl.BlockSpec((TB * Np, Ep), lambda b: (b, 0)),
        ),
        compiler_params=pltpu.CompilerParams(
            dimension_semantics=("parallel",),
            vmem_limit_bytes=vmem_limit,
        ),
    )(patches, w2d, gamma2d, beta2d)

    # Drop pad rows/channels, back to NCHW: [B*Np, Ep] -> [B, E, Hp, Wp].
    # TODO(synk): keep channels-last if the consumer allows, to skip this transpose.
    out = out.reshape(B, Np, Ep)[:, :N, :E]
    return out.reshape(B, Hp, Wp, E).transpose(0, 3, 1, 2)


def _reference(x, weight, gamma, beta, patch_size, num_groups):
    """Pure-JAX reference: strided conv + GroupNorm (eval-mode dropout = identity).

    Inputs are rounded to bf16 (matching the kernel's matmul operand precision) with
    f32 accumulation, so the comparison isolates real bugs rather than bf16 rounding.
    """
    xq = x.astype(jnp.bfloat16).astype(jnp.float32)
    wq = weight.astype(jnp.bfloat16).astype(jnp.float32)
    y = lax.conv_general_dilated(
        xq, wq, window_strides=(patch_size, patch_size), padding="VALID",
        dimension_numbers=("NCHW", "OIHW", "NCHW"),
        precision=lax.Precision.HIGHEST)
    B, E, Hp, Wp = y.shape
    G = num_groups
    yg = y.reshape(B, G, E // G, Hp, Wp)
    mean = yg.mean(axis=(2, 3, 4), keepdims=True)
    var = yg.var(axis=(2, 3, 4), keepdims=True)
    yn = ((yg - mean) / jnp.sqrt(var + 1e-5)).reshape(B, E, Hp, Wp)
    return yn * gamma.reshape(1, E, 1, 1) + beta.reshape(1, E, 1, 1)


if __name__ == "__main__":
    # Small shapes consistent with the module: patch_size=4, inc=4, embed_dim=32
    # -> GroupNorm groups = embed_dim/16 = 2
    B, C, H, W = 2, 4, 16, 16
    P, E = 4, 32
    G = E // 16

    key = jax.random.PRNGKey(0)
    kx, kw = jax.random.split(key)
    x = jax.random.normal(kx, (B, C, H, W), dtype=jnp.float32)
    # deterministic conv weight init (kaiming-uniform-ish scale), no bias (module uses bias=False)
    fan_in = C * P * P
    weight = jax.random.uniform(kw, (E, C, P, P), dtype=jnp.float32,
                                minval=-1.0, maxval=1.0) * (fan_in ** -0.5)
    gamma = jnp.ones((E,), dtype=jnp.float32)   # PyTorch GroupNorm default affine
    beta = jnp.zeros((E,), dtype=jnp.float32)

    out = patch_embed(x, weight, gamma, beta, patch_size=P, num_groups=G)
    out = jax.block_until_ready(out)

    ref = _reference(x, weight, gamma, beta, patch_size=P, num_groups=G)
    assert out.shape == (B, E, H // P, W // P), out.shape
    out_f32 = out.astype(jnp.float32)
    err = float(jnp.abs(out_f32 - ref).max())
    # bf16 output store contributes ~0.4% relative rounding on top of bf16 operands.
    assert jnp.allclose(out_f32, ref, atol=3e-2, rtol=3e-2), err
    print("KERNEL_OK")
</pallas_src>

<mosaic_0001>
module attributes {stable_mosaic.version = 11 : i64} {
  func.func @patch_embed_kernel(%arg0: i32, %arg1: memref<16x128xbf16, #tpu.memory_space<vmem>>, %arg2: memref<128x128xbf16, #tpu.memory_space<vmem>>, %arg3: memref<1x128xf32, #tpu.memory_space<vmem>>, %arg4: memref<1x128xf32, #tpu.memory_space<vmem>>, %arg5: memref<16x128xbf16, #tpu.memory_space<vmem>>) attributes {dimension_semantics = [#tpu.dimension_semantics<parallel>], iteration_bounds = array<i64: 2>, scalar_prefetch = 0 : i64, scratch_operands = 0 : i64, tpu.core_type = #tpu.core_type<tc>, window_params = [{transform_indices = @transform_0, window_bounds = array<i64: 16, 128>}, {pipeline_mode = #tpu.pipeline_mode<synchronous>, transform_indices = @transform_1, window_bounds = array<i64: 128, 128>}, {pipeline_mode = #tpu.pipeline_mode<synchronous>, transform_indices = @transform_2, window_bounds = array<i64: 1, 128>}, {pipeline_mode = #tpu.pipeline_mode<synchronous>, transform_indices = @transform_3, window_bounds = array<i64: 1, 128>}, {transform_indices = @transform_4, window_bounds = array<i64: 16, 128>}]} {
    %c0 = arith.constant 0 : index
    %c0_0 = arith.constant 0 : index
    %0 = vector.load %arg1[%c0, %c0_0] : memref<16x128xbf16, #tpu.memory_space<vmem>>, vector<16x128xbf16>
    %c0_1 = arith.constant 0 : index
    %c0_2 = arith.constant 0 : index
    %1 = vector.load %arg2[%c0_1, %c0_2] : memref<128x128xbf16, #tpu.memory_space<vmem>>, vector<128x128xbf16>
    %cst = arith.constant dense<0.000000e+00> : vector<16x128xf32>
    %2 = tpu.matmul %0, %1, %cst {dimension_numbers = #tpu.dot_dimension_numbers<[1], [0], [0], [1], [0, 0, 1, 1], [], []>} : vector<16x128xbf16>, vector<128x128xbf16>, vector<16x128xf32> -> vector<16x128xf32>
    %3 = vector.shape_cast %2 : vector<16x128xf32> to vector<1x16x128xf32>
    %cst_3 = arith.constant dense<0.000000e+00> : vector<1x128xf32>
    %4 = vector.multi_reduction <add>, %3, %cst_3 [1] : vector<1x16x128xf32> to vector<1x128xf32>
    %5 = arith.mulf %3, %3 : vector<1x16x128xf32>
    %cst_4 = arith.constant dense<0.000000e+00> : vector<1x128xf32>
    %6 = vector.multi_reduction <add>, %5, %cst_4 [1] : vector<1x16x128xf32> to vector<1x128xf32>
    %7 = vector.shape_cast %4 : vector<1x128xf32> to vector<1x8x16xf32>
    %cst_5 = arith.constant dense<0.000000e+00> : vector<1x8xf32>
    %8 = vector.multi_reduction <add>, %7, %cst_5 [2] : vector<1x8x16xf32> to vector<1x8xf32>
    %9 = vector.shape_cast %6 : vector<1x128xf32> to vector<1x8x16xf32>
    %cst_6 = arith.constant dense<0.000000e+00> : vector<1x8xf32>
    %10 = vector.multi_reduction <add>, %9, %cst_6 [2] : vector<1x8x16xf32> to vector<1x8xf32>
    %cst_7 = arith.constant 2.560000e+02 : f32
    %11 = vector.broadcast %cst_7 : f32 to vector<1x8xf32>
    %12 = arith.divf %8, %11 : vector<1x8xf32>
    %cst_8 = arith.constant 2.560000e+02 : f32
    %13 = vector.broadcast %cst_8 : f32 to vector<1x8xf32>
    %14 = arith.divf %10, %13 : vector<1x8xf32>
    %15 = arith.mulf %12, %12 : vector<1x8xf32>
    %16 = arith.subf %14, %15 : vector<1x8xf32>
    %cst_9 = arith.constant 0.000000e+00 : f32
    %17 = vector.broadcast %cst_9 : f32 to vector<1x8xf32>
    %18 = arith.maximumf %16, %17 : vector<1x8xf32>
    %cst_10 = arith.constant 9.99999974E-6 : f32
    %19 = vector.broadcast %cst_10 : f32 to vector<1x8xf32>
    %20 = arith.addf %18, %19 : vector<1x8xf32>
    %21 = math.rsqrt %20 : vector<1x8xf32>
    %22 = vector.shape_cast %12 : vector<1x8xf32> to vector<1x8x1xf32>
    %23 = vector.shape_cast %22 : vector<1x8x1xf32> to vector<1x8x1xf32>
    %24 = vector.broadcast %23 : vector<1x8x1xf32> to vector<1x8x16xf32>
    %25 = vector.shape_cast %24 : vector<1x8x16xf32> to vector<1x128xf32>
    %26 = vector.shape_cast %21 : vector<1x8xf32> to vector<1x8x1xf32>
    %27 = vector.shape_cast %26 : vector<1x8x1xf32> to vector<1x8x1xf32>
    %28 = vector.broadcast %27 : vector<1x8x1xf32> to vector<1x8x16xf32>
    %29 = vector.shape_cast %28 : vector<1x8x16xf32> to vector<1x128xf32>
    %c0_11 = arith.constant 0 : index
    %c0_12 = arith.constant 0 : index
    %30 = vector.load %arg3[%c0_11, %c0_12] : memref<1x128xf32, #tpu.memory_space<vmem>>, vector<1x128xf32>
    %31 = arith.mulf %29, %30 : vector<1x128xf32>
    %c0_13 = arith.constant 0 : index
    %c0_14 = arith.constant 0 : index
    %32 = vector.load %arg4[%c0_13, %c0_14] : memref<1x128xf32, #tpu.memory_space<vmem>>, vector<1x128xf32>
    %33 = arith.mulf %25, %31 : vector<1x128xf32>
    %34 = arith.subf %32, %33 : vector<1x128xf32>
    %35 = vector.shape_cast %31 : vector<1x128xf32> to vector<1x1x128xf32>
    %36 = vector.broadcast %35 : vector<1x1x128xf32> to vector<1x16x128xf32>
    %37 = arith.mulf %3, %36 : vector<1x16x128xf32>
    %38 = vector.shape_cast %34 : vector<1x128xf32> to vector<1x1x128xf32>
    %39 = vector.broadcast %38 : vector<1x1x128xf32> to vector<1x16x128xf32>
    %40 = arith.addf %37, %39 : vector<1x16x128xf32>
    %41 = vector.shape_cast %40 : vector<1x16x128xf32> to vector<16x128xf32>
    %42 = arith.truncf %41 : vector<16x128xf32> to vector<16x128xbf16>
    %c0_15 = arith.constant 0 : index
    %c0_16 = arith.constant 0 : index
    %43 = vector.load %arg5[%c0_15, %c0_16] : memref<16x128xbf16, #tpu.memory_space<vmem>>, vector<16x128xbf16>
    tpu.vector_store %arg5[%c0_15, %c0_16], %42 {strides = array<i32>} : memref<16x128xbf16, #tpu.memory_space<vmem>>, vector<16x128xbf16>,
    return
  }
  func.func @transform_0(%arg0: i32) -> (i32, i32) {
    %c0_i32 = arith.constant 0 : i32
    %c0_i32_0 = arith.constant 0 : i32
    return %arg0, %c0_i32 : i32, i32
  }
  func.func @transform_1(%arg0: i32) -> (i32, i32) {
    %c0_i32 = arith.constant 0 : i32
    %c0_i32_0 = arith.constant 0 : i32
    %c0_i32_1 = arith.constant 0 : i32
    return %c0_i32, %c0_i32_0 : i32, i32
  }
  func.func @transform_2(%arg0: i32) -> (i32, i32) {
    %c0_i32 = arith.constant 0 : i32
    %c0_i32_0 = arith.constant 0 : i32
    %c0_i32_1 = arith.constant 0 : i32
    return %c0_i32, %c0_i32_0 : i32, i32
  }
  func.func @transform_3(%arg0: i32) -> (i32, i32) {
    %c0_i32 = arith.constant 0 : i32
    %c0_i32_0 = arith.constant 0 : i32
    %c0_i32_1 = arith.constant 0 : i32
    return %c0_i32, %c0_i32_0 : i32, i32
  }
  func.func @transform_4(%arg0: i32) -> (i32, i32) {
    %c0_i32 = arith.constant 0 : i32
    %c0_i32_0 = arith.constant 0 : i32
    return %arg0, %c0_i32 : i32, i32
  }
}

</mosaic_0001>

<llo_original>
// kernel: tpu_custom_call.1
$region0: #{tpu_custom_call.1}
  #allocation0 [shape = 'u32[]', space=smem, size = 0x4, offset = 0x4, fixed_abs, tag = 'smem constant byte address 0x4 - core index']
  #allocation1 [shape = 'u32[144,128]{1,0:T(1,128)}', space=vmem, size = 0x12000, scoped, tag = 'internal scratch']
  %s0 = inlined_call_operand.hbm [shape: bf16[32,128], index: 0, kind: input, shape index: {}]
  %s1 = inlined_call_operand.hbm [shape: bf16[128,128], index: 1, kind: input, shape index: {}]
  %s2 = inlined_call_operand.vmem [shape: f32[1,128], index: 2, kind: input, shape index: {}]
  %s3 = inlined_call_operand.vmem [shape: f32[1,128], index: 3, kind: input, shape index: {}]
  %s4 = inlined_call_operand.hbm [shape: bf16[32,128], index: 4, kind: output, shape index: {}]
  %s5 = sld [smem:[#allocation0]]
  $region57: #{tpu_custom_call.1} parent=0
    _
  %s7 = ssub.s32 1, %s5
  %s8 = scalar_select 0, %s7, %s5
  $region1: #{tpu_custom_call.1} parent=0
    #allocation2 [shape = 'u8[8192]{0}', space=vmem, size = 0x2000, scoped, tag = 'input window, operand 0']
    #allocation3 [shape = 's32[2]{0}', space=sflag, size = 0x8, scoped, tag = 'scoped memory for tpu_custom_call.1']
    #allocation4 [shape = 's32[2]{0}', space=sflag, size = 0x8, scoped, tag = 'scoped memory for tpu_custom_call.1']
    #allocation5 [shape = 'u8[32768]{0}', space=vmem, size = 0x8000, scoped, tag = 'input window, operand 1, single buffered']
    #allocation6 [shape = 's32[1]{0}', space=sflag, size = 0x4, scoped, tag = 'scoped memory for tpu_custom_call.1']
    #allocation7 [shape = 'u8[8192]{0}', space=vmem, size = 0x2000, scoped, tag = 'output window, operand 0']
    %9 = vsyncpa [#allocation3], 0
    %s10 = scalar_lea.sflag [#allocation3], 1
    %11 = vsyncpa %s10, 0
    %12 = vsyncpa [#allocation6], 0
    %13 = vsyncpa [#allocation4], 0
    %s14 = scalar_lea.sflag [#allocation4], 1
    %15 = vsyncpa %s14, 0
    loop: start=0, step=1, limit=4
    $region2: #{tpu_custom_call.1} parent=1 // loop_pre_header
      _
    $region3: #{tpu_custom_call.1} parent=1 // loop_header
      %s17 = sphi 0, %s21
      %p18 = scmp.ge.s32.totalorder %s17, 4
      %s27 = sphi 0, %s29
      %s30 = sphi 0, %s27
      %s31 = sphi 0, %s30
      %s47 = sphi 0, %s31
      %s51 = sphi 0, %s51
      %s53 = sphi 0, %s51
      %s54 = sphi 0, %s53
      %s68 = sphi 0, %s54
      %s72 = sphi 0, %s72
      %s74 = sphi 0, %s72
      %s75 = sphi 0, %s74
      %s89 = sphi 0, %s75
      %s93 = sphi 0, %s93
      %s95 = sphi 0, %s93
      %s96 = sphi 0, %s95
      %s110 = sphi 0, %s96
      %s116 = sphi 0, %s118
      %s119 = sphi 0, %s116
      %s120 = sphi 0, %s119
      %s136 = sphi 0, %s120
    $region4: #{tpu_custom_call.1} parent=1 // loop_header_branch
      %20 = sbr.rel (%p18) target = $region8
    $region5: #{tpu_custom_call.1} parent=1 // loop_body
      %s22 = ssub.s32 %s17, 1
      %s23 = ssub.s32 %s17, 2
      %s24 = sadd.s32 %s17, 1
      %s25 = ssub.s32 %s17, %s24
      %p26 = scmp.eq.s32.totalorder %s25, 0
      %s28 = sadd.s32 %s27, 1
      %s29 = scalar_select %p26, %s27, %s28
      %p32 = pneg %p26
      %p33 = scmp.eq.s32.totalorder %s17, 1
      %p34 = por %p32, %p33
      %p35 = scmp.ne.s32.totalorder %s27, %s30
      %p36 = scmp.eq.s32.totalorder %s17, 0
      %p37 = por %p35, %p36
      %p38 = scmp.ne.s32.totalorder %s27, %s30
      %p39 = scmp.eq.s32.totalorder %s22, 1
      %p40 = por %p38, %p39
      %p41 = scmp.ne.s32.totalorder %s30, %s31
      %p42 = scmp.eq.s32.totalorder %s22, 0
      %p43 = por %p41, %p42
      %p44 = scmp.ne.s32.totalorder %s30, %s31
      %p45 = scmp.eq.s32.totalorder %s23, 1
      %p46 = por %p44, %p45
      %p48 = scmp.ne.s32.totalorder %s31, %s47
      %p49 = scmp.eq.s32.totalorder %s23, 0
      %p50 = por %p48, %p49
      %s52 = sadd.s32 %s51, 1
      %p55 = scmp.eq.s32.totalorder %s17, 1
      %p56 = scmp.ne.s32.totalorder %s51, %s53
      %p57 = scmp.eq.s32.totalorder %s17, 0
      %p58 = por %p56, %p57
      %p59 = scmp.ne.s32.totalorder %s51, %s53
      %p60 = scmp.eq.s32.totalorder %s22, 1
      %p61 = por %p59, %p60
      %p62 = scmp.ne.s32.totalorder %s53, %s54
      %p63 = scmp.eq.s32.totalorder %s22, 0
      %p64 = por %p62, %p63
      %p65 = scmp.ne.s32.totalorder %s53, %s54
      %p66 = scmp.eq.s32.totalorder %s23, 1
      %p67 = por %p65, %p66
      %p69 = scmp.ne.s32.totalorder %s54, %s68
      %p70 = scmp.eq.s32.totalorder %s23, 0
      %p71 = por %p69, %p70
      %s73 = sadd.s32 %s72, 1
      %p76 = scmp.eq.s32.totalorder %s17, 1
      %p77 = scmp.ne.s32.totalorder %s72, %s74
      %p78 = scmp.eq.s32.totalorder %s17, 0
      %p79 = por %p77, %p78
      %p80 = scmp.ne.s32.totalorder %s72, %s74
      %p81 = scmp.eq.s32.totalorder %s22, 1
      %p82 = por %p80, %p81
      %p83 = scmp.ne.s32.totalorder %s74, %s75
      %p84 = scmp.eq.s32.totalorder %s22, 0
      %p85 = por %p83, %p84
      %p86 = scmp.ne.s32.totalorder %s74, %s75
      %p87 = scmp.eq.s32.totalorder %s23, 1
      %p88 = por %p86, %p87
      %p90 = scmp.ne.s32.totalorder %s75, %s89
      %p91 = scmp.eq.s32.totalorder %s23, 0
      %p92 = por %p90, %p91
      %s94 = sadd.s32 %s93, 1
      %p97 = scmp.eq.s32.totalorder %s17, 1
      %p98 = scmp.ne.s32.totalorder %s93, %s95
      %p99 = scmp.eq.s32.totalorder %s17, 0
      %p100 = por %p98, %p99
      %p101 = scmp.ne.s32.totalorder %s93, %s95
      %p102 = scmp.eq.s32.totalorder %s22, 1
      %p103 = por %p101, %p102
      %p104 = scmp.ne.s32.totalorder %s95, %s96
      %p105 = scmp.eq.s32.totalorder %s22, 0
      %p106 = por %p104, %p105
      %p107 = scmp.ne.s32.totalorder %s95, %s96
      %p108 = scmp.eq.s32.totalorder %s23, 1
      %p109 = por %p107, %p108
      %p111 = scmp.ne.s32.totalorder %s96, %s110
      %p112 = scmp.eq.s32.totalorder %s23, 0
      %p113 = por %p111, %p112
      %s114 = ssub.s32 %s17, %s24
      %p115 = scmp.eq.s32.totalorder %s114, 0
      %s117 = sadd.s32 %s116, 1
      %s118 = scalar_select %p115, %s116, %s117
      %p121 = pneg %p115
      %p122 = scmp.eq.s32.totalorder %s17, 1
      %p123 = por %p121, %p122
      %p124 = scmp.ne.s32.totalorder %s116, %s119
      %p125 = scmp.eq.s32.totalorder %s17, 0
      %p126 = por %p124, %p125
      %p127 = scmp.ne.s32.totalorder %s116, %s119
      %p128 = scmp.eq.s32.totalorder %s22, 1
      %p129 = por %p127, %p128
      %p130 = scmp.ne.s32.totalorder %s119, %s120
      %p131 = scmp.eq.s32.totalorder %s22, 0
      %p132 = por %p130, %p131
      %p133 = scmp.ne.s32.totalorder %s119, %s120
      %p134 = scmp.eq.s32.totalorder %s23, 1
      %p135 = por %p133, %p134
      %p137 = scmp.ne.s32.totalorder %s120, %s136
      %p138 = scmp.eq.s32.totalorder %s23, 0
      %p139 = por %p137, %p138
      %p140 = scmp.le.s32.totalorder 1, %s17
      %p141 = scmp.lt.s32.totalorder %s17, 3
      %p142 = pnand %p140, %p141
      %p143 = pneg %p142
      // Predicated region
      $region9: #{tpu_custom_call.1} parent=5 // pred_check
        _
      $region10: #{tpu_custom_call.1} parent=5 // pred_check_branch
        %145 = sbr.rel (%p142) target = $region12
      $region11: #{tpu_custom_call.1} parent=5 // pred_region
        %s146 = ssub.s32 %s17, 1
        // Predicated region
        $region13: #{tpu_custom_call.1} parent=11 // pred_check
          %p147 = pneg %p64
        $region14: #{tpu_custom_call.1} parent=11 // pred_check_branch
          %149 = sbr.rel (%p147) target = $region16
        $region15: #{tpu_custom_call.1} parent=11 // pred_region
          %s151 = ssub.s32 1024, 1024
          %152 = vsyncadd [#allocation6], %s151
          %s153 = sshll.u32 [#allocation5], 4
          %s154 = int_to_ptr.vmem [resolvable:$true] %s153
          %159 = dma.hbm_to_vmem [thread:$0]  %s1, 1024, %s154, [#allocation6], 64, 64, 4
        $region16: #{tpu_custom_call.1} parent=11 // pred_fallthru
          _
        // Predicated region
        $region17: #{tpu_custom_call.1} parent=11 // pred_check
          %p160 = pneg %p85
        $region18: #{tpu_custom_call.1} parent=11 // pred_check_branch
          %162 = sbr.rel (%p160) target = $region20
        $region19: #{tpu_custom_call.1} parent=11 // pred_region
          _
        $region20: #{tpu_custom_call.1} parent=11 // pred_fallthru
          _
        // Predicated region
        $region21: #{tpu_custom_call.1} parent=11 // pred_check
          %p163 = pneg %p106
        $region22: #{tpu_custom_call.1} parent=11 // pred_check_branch
          %165 = sbr.rel (%p163) target = $region24
        $region23: #{tpu_custom_call.1} parent=11 // pred_region
          _
        $region24: #{tpu_custom_call.1} parent=11 // pred_fallthru
          _
      $region12: #{tpu_custom_call.1} parent=5 // pred_fallthru
        _
      %p166 = scmp.lt.s32.totalorder %s17, 2
      // Predicated region
      $region25: #{tpu_custom_call.1} parent=5 // pred_check
        %p167 = pneg %p166
      $region26: #{tpu_custom_call.1} parent=5 // pred_check_branch
        %169 = sbr.rel (%p167) target = $region28
      $region27: #{tpu_custom_call.1} parent=5 // pred_region
        // Predicated region
        $region29: #{tpu_custom_call.1} parent=27 // pred_check
          %p170 = pneg %p37
        $region30: #{tpu_custom_call.1} parent=27 // pred_check_branch
          %172 = sbr.rel (%p170) target = $region32
        $region31: #{tpu_custom_call.1} parent=27 // pred_region
          %s173 = sand.u32 %s27, 1
          %s174 = scalar_lea.sflag [#allocation3], %s173
          %s175 = sand.u32 %s27, 1
          %s176 = smul.addr %s175, 8
          %s177 = scalar_lea.vmem [#allocation2], %s176
          %s178 = smul.u32 2, %s17
          %s180 = ssub.s32 128, 128
          %181 = vsyncadd %s174, %s180
          %s182 = smul.addr %s178, 64
          %s183 = scalar_lea.hbm %s0, %s182
          %s184 = sshll.u32 %s177, 4
          %s185 = int_to_ptr.vmem [resolvable:$true] %s184
          %190 = dma.hbm_to_vmem [thread:$0]  %s183, 128, %s185, %s174, 64, 64, 4
        $region32: #{tpu_custom_call.1} parent=27 // pred_fallthru
          _
      $region28: #{tpu_custom_call.1} parent=5 // pred_fallthru
        _
      %p191 = scmp.le.s32.totalorder 1, %s17
      %p192 = scmp.lt.s32.totalorder %s17, 3
      %p193 = pnand %p191, %p192
      %p194 = pneg %p193
      // Predicated region
      $region33: #{tpu_custom_call.1} parent=5 // pred_check
        _
      $region34: #{tpu_custom_call.1} parent=5 // pred_check_branch
        %196 = sbr.rel (%p193) target = $region36
      $region35: #{tpu_custom_call.1} parent=5 // pred_region
        %s197 = ssub.s32 %s17, 1
        %s198 = sand.u32 %s30, 1
        %s199 = scalar_lea.sflag [#allocation3], %s198
        %s200 = sand.u32 %s30, 1
        %s201 = smul.addr %s200, 8
        %s202 = scalar_lea.vmem [#allocation2], %s201
        // Predicated region
        $region37: #{tpu_custom_call.1} parent=35 // pred_check
          %p203 = pneg %p43
        $region38: #{tpu_custom_call.1} parent=35 // pred_check_branch
          %205 = sbr.rel (%p203) target = $region40
        $region39: #{tpu_custom_call.1} parent=35 // pred_region
          %206 = dma.done %s199, 128
        $region40: #{tpu_custom_call.1} parent=35 // pred_fallthru
          _
        // Predicated region
        $region41: #{tpu_custom_call.1} parent=35 // pred_check
          %p207 = pneg %p64
        $region42: #{tpu_custom_call.1} parent=35 // pred_check_branch
          %209 = sbr.rel (%p207) target = $region44
        $region43: #{tpu_custom_call.1} parent=35 // pred_region
          %210 = dma.done [#allocation6], 1024
        $region44: #{tpu_custom_call.1} parent=35 // pred_fallthru
          _
        %s211 = sand.u32 %s30, 1
        %s212 = scalar_lea.sflag [#allocation3], %s211
        %s213 = sand.u32 %s30, 1
        %s214 = smul.addr %s213, 8
        %s215 = scalar_lea.vmem [#allocation2], %s214
        %p216 = pneg %p43
        %p217 = pneg %p40
        %p218 = pneg %p64
        %p219 = pneg %p61
        %p220 = pneg %p85
        %p221 = pneg %p82
        %p222 = pneg %p106
        %p223 = pneg %p103
        %p224 = pneg %p132
        %p225 = pneg %p129
        %s226 = sand.u32 %s119, 1
        %s227 = scalar_lea.sflag [#allocation4], %s226
        %s228 = sand.u32 %s119, 1
        %s229 = smul.addr %s228, 8
        %s230 = scalar_lea.vmem [#allocation7], %s229
        %s231 = smul.u32 2, %s22
        %s232 = smul.u32 2, %s22
        %v234 = vld [vmem:[%s202] sm:$0xf]
        %v235 = vld [vmem:[%s202 + $0x4] sm:$0xf]
        %v236 = vld [vmem:[#allocation5] sm:$0xf]
        %v237 = vld [vmem:[#allocation5 + $0x4] sm:$0xf]
        %v238 = vld [vmem:[#allocation5 + $0x8] sm:$0xf]
        %v239 = vld [vmem:[#allocation5 + $0xc] sm:$0xf]
        %v240 = vld [vmem:[#allocation5 + $0x10] sm:$0xf]
        %v241 = vld [vmem:[#allocation5 + $0x14] sm:$0xf]
        %v242 = vld [vmem:[#allocation5 + $0x18] sm:$0xf]
        %v243 = vld [vmem:[#allocation5 + $0x1c] sm:$0xf]
        %v244 = vld [vmem:[#allocation5 + $0x20] sm:$0xf]
        %v245 = vld [vmem:[#allocation5 + $0x24] sm:$0xf]
        %v246 = vld [vmem:[#allocation5 + $0x28] sm:$0xf]
        %v247 = vld [vmem:[#allocation5 + $0x2c] sm:$0xf]
        %v248 = vld [vmem:[#allocation5 + $0x30] sm:$0xf]
        %v249 = vld [vmem:[#allocation5 + $0x34] sm:$0xf]
        %v250 = vld [vmem:[#allocation5 + $0x38] sm:$0xf]
        %v251 = vld [vmem:[#allocation5 + $0x3c] sm:$0xf]
        %v254 = vunpack.c.l.b16 %v234
        %v255 = vunpack.c.l.b16 %v235
        %v256 = vpack.c.b16 %v255, %v254
        %v274 = vunpack.c.l.b16 %v236
        %v275 = vunpack.c.l.b16 %v237
        %v276 = vunpack.c.l.b16 %v238
        %v277 = vunpack.c.l.b16 %v239
        %v278 = vunpack.c.l.b16 %v240
        %v279 = vunpack.c.l.b16 %v241
        %v280 = vunpack.c.l.b16 %v242
        %v281 = vunpack.c.l.b16 %v243
        %v282 = vunpack.c.l.b16 %v244
        %v283 = vunpack.c.l.b16 %v245
        %v284 = vunpack.c.l.b16 %v246
        %v285 = vunpack.c.l.b16 %v247
        %v286 = vunpack.c.l.b16 %v248
        %v287 = vunpack.c.l.b16 %v249
        %v288 = vunpack.c.l.b16 %v250
        %v289 = vunpack.c.l.b16 %v251
        %v290 = vpack.c.b16 %v275, %v274
        %v291 = vpack.c.b16 %v277, %v276
        %v292 = vpack.c.b16 %v279, %v278
        %v293 = vpack.c.b16 %v281, %v280
        %v294 = vpack.c.b16 %v283, %v282
        %v295 = vpack.c.b16 %v285, %v284
        %v296 = vpack.c.b16 %v287, %v286
        %v297 = vpack.c.b16 %v289, %v288
        %306 = vmatprep.subr.bf16.mxu0 0
        %307 = vmatpush1.bf16.msra.mxu0 %v290
        %308 = vmatprep.subr.bf16.mxu0 0
        %309 = vmatpush1.bf16.msra.mxu0 %v291
        %310 = vmatprep.subr.bf16.mxu0 0
        %311 = vmatpush1.bf16.msra.mxu0 %v292
        %312 = vmatprep.subr.bf16.mxu0 0
        %313 = vmatpush1.bf16.msra.mxu0 %v293
        %314 = vmatprep.subr.bf16.mxu0 0
        %315 = vmatpush1.bf16.msra.mxu0 %v294
        %316 = vmatprep.subr.bf16.mxu0 0
        %317 = vmatpush1.bf16.msra.mxu0 %v295
        %318 = vmatprep.subr.bf16.mxu0 0
        %319 = vmatpush1.bf16.msra.mxu0 %v296
        %320 = vmatprep.subr.bf16.mxu0 0
        %321 = vmatpush1.bf16.msra.mxu0 %v297
        %322 = vmatprep.subr.bf16.mxu0 0
        %323 = vmatpush1.bf16.msra.mxu0 0
        %324 = vmatprep.subr.bf16.mxu0 0
        %325 = vmatpush1.bf16.msra.mxu0 0
        %326 = vmatprep.subr.bf16.mxu0 0
        %327 = vmatpush1.bf16.msra.mxu0 0
        %328 = vmatprep.subr.bf16.mxu0 0
        %329 = vmatpush1.bf16.msra.mxu0 0
        %330 = vmatprep.subr.bf16.mxu0 0
        %331 = vmatpush1.bf16.msra.mxu0 0
        %332 = vmatprep.subr.bf16.mxu0 0
        %333 = vmatpush1.bf16.msra.mxu0 0
        %334 = vmatprep.subr.bf16.mxu0 0
        %335 = vmatpush1.bf16.msra.mxu0 0
        %336 = vmatprep.subr.bf16.mxu0 0
        %337 = vmatpush1.bf16.msra.mxu0 0
        %338 = vmatprep.mubr.bf16.mxu0 0
        %339 = vmatmul.mubr.bf16.gmra.mrb[0].mxu0 %v256
        %v340 = vpop.f32.mrb[0].mxu0
        %v341 = vadd.f32 0.0, %v340
        %v342 = vpop.f32.mrb[0].mxu0
        %v343 = vpop.f32.mrb[0].mxu0
        %v344 = vadd.f32 0.0, %v343
        %v345 = vpop.f32.mrb[0].mxu0
        %346 = vdwg.mxu0
        %v347 = vadd.f32 %v341, %v344
        %v348 = vrot.slane %v347, 4
        %v349 = vadd.f32 %v347, %v348
        %v350 = vrot.slane %v349, 2
        %v351 = vadd.f32 %v349, %v350
        %v352 = vrot.slane %v351, 1
        %v353 = vadd.f32 %v351, %v352
        %v354 = vmul.f32 %v341, %v341
        %v355 = vmul.f32 %v344, %v344
        %v356 = vadd.f32 %v354, %v355
        %v357 = vrot.slane %v356, 4
        %v358 = vadd.f32 %v356, %v357
        %v359 = vrot.slane %v358, 2
        %v360 = vadd.f32 %v358, %v359
        %v361 = vrot.slane %v360, 1
        %v362 = vadd.f32 %v360, %v361
        %364 = vrot.lane.b32.xlu0 %v353, 112
        %v365 = vpop.permute.xlu0 %364
        %367 = vrot.lane.b32.xlu0 %v353, 96
        %v368 = vpop.permute.xlu0 %367
        %370 = vrot.lane.b32.xlu0 %v353, 80
        %v371 = vpop.permute.xlu0 %370
        %373 = vrot.lane.b32.xlu0 %v353, 64
        %v374 = vpop.permute.xlu0 %373
        %376 = vrot.lane.b32.xlu0 %v353, 48
        %v377 = vpop.permute.xlu0 %376
        %379 = vrot.lane.b32.xlu0 %v353, 32
        %v380 = vpop.permute.xlu0 %379
        %382 = vrot.lane.b32.xlu0 %v353, 16
        %v383 = vpop.permute.xlu0 %382
        %v385 = vcombine.low %v353, %v368
        %v387 = vunpack.c.l.s4 1983009808
        %v388 = vunpack.c.0.s8 %v387
        %v389 = vlaneseq
        %v390 = vshrl.u32 %v389, 7
        %v391 = vsub.s32 %v388, %v390
        %v392 = vrot.slane %v385, %v391
        %v393 = vcombine.low %v365, %v371
        %v395 = vunpack.c.l.s4 1983009808
        %v396 = vunpack.c.0.s8 %v395
        %v397 = vlaneseq
        %v398 = vshrl.u32 %v397, 7
        %v399 = vsub.s32 %v396, %v398
        %v400 = vrot.slane %v393, %v399
        %v401 = vcombine.low %v374, %v380
        %v403 = vunpack.c.l.s4 1983009808
        %v404 = vunpack.c.0.s8 %v403
        %v405 = vlaneseq
        %v406 = vshrl.u32 %v405, 7
        %v407 = vsub.s32 %v404, %v406
        %v408 = vrot.slane %v401, %v407
        %v409 = vcombine.low %v377, %v383
        %v411 = vunpack.c.l.s4 1983009808
        %v412 = vunpack.c.0.s8 %v411
        %v413 = vlaneseq
        %v414 = vshrl.u32 %v413, 7
        %v415 = vsub.s32 %v412, %v414
        %v416 = vrot.slane %v409, %v415
        %v417 = vcombine.low %v392, %v400
        %v419 = vunpack.c.l.s4 1934713408
        %v420 = vunpack.c.0.s8 %v419
        %v421 = vlaneseq
        %v422 = vshrl.u32 %v421, 7
        %v423 = vsub.s32 %v420, %v422
        %v424 = vrot.slane %v417, %v423
        %v425 = vcombine.low %v408, %v416
        %v427 = vunpack.c.l.s4 1934713408
        %v428 = vunpack.c.0.s8 %v427
        %v429 = vlaneseq
        %v430 = vshrl.u32 %v429, 7
        %v431 = vsub.s32 %v428, %v430
        %v432 = vrot.slane %v425, %v431
        %v433 = vcombine.low %v424, %v432
        %vm434 = vcmask 130048
        %v435 = vsel %vm434, %v433, 0.0
        %436 = vadd.xlane.f32.xlu0 %v435
        %v437 = vpop.xlane.xlu0 %436
        %439 = vrot.lane.b32.xlu0 %v362, 112
        %v440 = vpop.permute.xlu0 %439
        %442 = vrot.lane.b32.xlu0 %v362, 96
        %v443 = vpop.permute.xlu0 %442
        %445 = vrot.lane.b32.xlu0 %v362, 80
        %v446 = vpop.permute.xlu0 %445
        %448 = vrot.lane.b32.xlu0 %v362, 64
        %v449 = vpop.permute.xlu0 %448
        %451 = vrot.lane.b32.xlu0 %v362, 48
        %v452 = vpop.permute.xlu0 %451
        %454 = vrot.lane.b32.xlu0 %v362, 32
        %v455 = vpop.permute.xlu0 %454
        %457 = vrot.lane.b32.xlu0 %v362, 16
        %v458 = vpop.permute.xlu0 %457
        %v460 = vcombine.low %v362, %v443
        %v462 = vunpack.c.l.s4 1983009808
        %v463 = vunpack.c.0.s8 %v462
        %v464 = vlaneseq
        %v465 = vshrl.u32 %v464, 7
        %v466 = vsub.s32 %v463, %v465
        %v467 = vrot.slane %v460, %v466
        %v468 = vcombine.low %v440, %v446
        %v470 = vunpack.c.l.s4 1983009808
        %v471 = vunpack.c.0.s8 %v470
        %v472 = vlaneseq
        %v473 = vshrl.u32 %v472, 7
        %v474 = vsub.s32 %v471, %v473
        %v475 = vrot.slane %v468, %v474
        %v476 = vcombine.low %v449, %v455
        %v478 = vunpack.c.l.s4 1983009808
        %v479 = vunpack.c.0.s8 %v478
        %v480 = vlaneseq
        %v481 = vshrl.u32 %v480, 7
        %v482 = vsub.s32 %v479, %v481
        %v483 = vrot.slane %v476, %v482
        %v484 = vcombine.low %v452, %v458
        %v486 = vunpack.c.l.s4 1983009808
        %v487 = vunpack.c.0.s8 %v486
        %v488 = vlaneseq
        %v489 = vshrl.u32 %v488, 7
        %v490 = vsub.s32 %v487, %v489
        %v491 = vrot.slane %v484, %v490
        %v492 = vcombine.low %v467, %v475
        %v494 = vunpack.c.l.s4 1934713408
        %v495 = vunpack.c.0.s8 %v494
        %v496 = vlaneseq
        %v497 = vshrl.u32 %v496, 7
        %v498 = vsub.s32 %v495, %v497
        %v499 = vrot.slane %v492, %v498
        %v500 = vcombine.low %v483, %v491
        %v502 = vunpack.c.l.s4 1934713408
        %v503 = vunpack.c.0.s8 %v502
        %v504 = vlaneseq
        %v505 = vshrl.u32 %v504, 7
        %v506 = vsub.s32 %v503, %v505
        %v507 = vrot.slane %v500, %v506
        %v508 = vcombine.low %v499, %v507
        %v509 = vsel %vm434, %v508, 0.0
        %510 = vadd.xlane.f32.xlu0 %v509
        %v511 = vpop.xlane.xlu0 %510
        %v512 = vrcp.pop 256.0
        %v513 = vmul.f32 %v437, %v512
        %v514 = vmul.f32 %v511, %v512
        %v515 = vmul.f32 %v513, %v513
        %v516 = vsub.f32 %v514, %v515
        %v517 = vmax.f32 %v516, 0.0
        %v518 = vadd.f32 %v517, 1e-05
        %v519 = vrsqrt.pop %v518
        %v520 = vcombine.high %v513, 0.0
        %v522 = vunpack.c.l.s4 1983009808
        %v523 = vunpack.c.0.s8 %v522
        %v524 = vlaneseq
        %v525 = vshrl.u32 %v524, 7
        %v526 = vsub.s32 %v523, %v525
        %v527 = vrot.slane %v513, %v526
        %v529 = vunpack.c.l.s4 1983009808
        %v530 = vunpack.c.0.s8 %v529
        %v531 = vlaneseq
        %v532 = vshrl.u32 %v531, 7
        %v533 = vsub.s32 %v530, %v532
        %v534 = vrot.slane %v520, %v533
        %v535 = vcombine.high %v527, 0.0
        %v537 = vunpack.c.l.s4 1934713408
        %v538 = vunpack.c.0.s8 %v537
        %v539 = vlaneseq
        %v540 = vshrl.u32 %v539, 7
        %v541 = vsub.s32 %v538, %v540
        %v542 = vrot.slane %v527, %v541
        %v544 = vunpack.c.l.s4 1934713408
        %v545 = vunpack.c.0.s8 %v544
        %v546 = vlaneseq
        %v547 = vshrl.u32 %v546, 7
        %v548 = vsub.s32 %v545, %v547
        %v549 = vrot.slane %v535, %v548
        %v550 = vcombine.high %v534, 0.0
        %v552 = vunpack.c.l.s4 1934713408
        %v553 = vunpack.c.0.s8 %v552
        %v554 = vlaneseq
        %v555 = vshrl.u32 %v554, 7
        %v556 = vsub.s32 %v553, %v555
        %v557 = vrot.slane %v534, %v556
        %v559 = vunpack.c.l.s4 1934713408
        %v560 = vunpack.c.0.s8 %v559
        %v561 = vlaneseq
        %v562 = vshrl.u32 %v561, 7
        %v563 = vsub.s32 %v560, %v562
        %v564 = vrot.slane %v550, %v563
        %v565 = vcombine.high %v542, 0.0
        %v566 = vcombine.high %v549, 0.0
        %v567 = vcombine.high %v557, 0.0
        %v568 = vcombine.high %v564, 0.0
        %570 = vrot.lane.b32.xlu0 %v565, 16
        %v571 = vpop.permute.xlu0 %570
        %574 = vrot.lane.b32.xlu0 %v549, 32
        %v575 = vpop.permute.xlu0 %574
        %578 = vrot.lane.b32.xlu0 %v566, 48
        %v579 = vpop.permute.xlu0 %578
        %582 = vrot.lane.b32.xlu0 %v557, 64
        %v583 = vpop.permute.xlu0 %582
        %586 = vrot.lane.b32.xlu0 %v567, 80
        %v587 = vpop.permute.xlu0 %586
        %590 = vrot.lane.b32.xlu0 %v564, 96
        %v591 = vpop.permute.xlu0 %590
        %594 = vrot.lane.b32.xlu0 %v568, 112
        %v595 = vpop.permute.xlu0 %594
        %v597 = vsel %vm434, %v542, %v571
        %vm598 = vcmask 261120
        %v599 = vsel %vm598, %v597, %v575
        %vm600 = vcmask 392192
        %v601 = vsel %vm600, %v599, %v579
        %vm602 = vcmask 523264
        %v603 = vsel %vm602, %v601, %v583
        %vm604 = vcmask 654336
        %v605 = vsel %vm604, %v603, %v587
        %vm606 = vcmask 785408
        %v607 = vsel %vm606, %v605, %v591
        %vm608 = vcmask 916480
        %v609 = vsel %vm608, %v607, %v595
        %v610 = vcombine.high %v519, 0.0
        %v612 = vunpack.c.l.s4 1983009808
        %v613 = vunpack.c.0.s8 %v612
        %v614 = vlaneseq
        %v615 = vshrl.u32 %v614, 7
        %v616 = vsub.s32 %v613, %v615
        %v617 = vrot.slane %v519, %v616
        %v619 = vunpack.c.l.s4 1983009808
        %v620 = vunpack.c.0.s8 %v619
        %v621 = vlaneseq
        %v622 = vshrl.u32 %v621, 7
        %v623 = vsub.s32 %v620, %v622
        %v624 = vrot.slane %v610, %v623
        %v625 = vcombine.high %v617, 0.0
        %v627 = vunpack.c.l.s4 1934713408
        %v628 = vunpack.c.0.s8 %v627
        %v629 = vlaneseq
        %v630 = vshrl.u32 %v629, 7
        %v631 = vsub.s32 %v628, %v630
        %v632 = vrot.slane %v617, %v631
        %v634 = vunpack.c.l.s4 1934713408
        %v635 = vunpack.c.0.s8 %v634
        %v636 = vlaneseq
        %v637 = vshrl.u32 %v636, 7
        %v638 = vsub.s32 %v635, %v637
        %v639 = vrot.slane %v625, %v638
        %v640 = vcombine.high %v624, 0.0
        %v642 = vunpack.c.l.s4 1934713408
        %v643 = vunpack.c.0.s8 %v642
        %v644 = vlaneseq
        %v645 = vshrl.u32 %v644, 7
        %v646 = vsub.s32 %v643, %v645
        %v647 = vrot.slane %v624, %v646
        %v649 = vunpack.c.l.s4 1934713408
        %v650 = vunpack.c.0.s8 %v649
        %v651 = vlaneseq
        %v652 = vshrl.u32 %v651, 7
        %v653 = vsub.s32 %v650, %v652
        %v654 = vrot.slane %v640, %v653
        %v655 = vcombine.high %v632, 0.0
        %v656 = vcombine.high %v639, 0.0
        %v657 = vcombine.high %v647, 0.0
        %v658 = vcombine.high %v654, 0.0
        %660 = vrot.lane.b32.xlu0 %v655, 16
        %v661 = vpop.permute.xlu0 %660
        %664 = vrot.lane.b32.xlu0 %v639, 32
        %v665 = vpop.permute.xlu0 %664
        %668 = vrot.lane.b32.xlu0 %v656, 48
        %v669 = vpop.permute.xlu0 %668
        %672 = vrot.lane.b32.xlu0 %v647, 64
        %v673 = vpop.permute.xlu0 %672
        %676 = vrot.lane.b32.xlu0 %v657, 80
        %v677 = vpop.permute.xlu0 %676
        %680 = vrot.lane.b32.xlu0 %v654, 96
        %v681 = vpop.permute.xlu0 %680
        %684 = vrot.lane.b32.xlu0 %v658, 112
        %v685 = vpop.permute.xlu0 %684
        %v687 = vsel %vm434, %v632, %v661
        %v688 = vsel %vm598, %v687, %v665
        %v689 = vsel %vm600, %v688, %v669
        %v690 = vsel %vm602, %v689, %v673
        %v691 = vsel %vm604, %v690, %v677
        %v692 = vsel %vm606, %v691, %v681
        %v693 = vsel %vm608, %v692, %v685
        %v694 = vld [vmem:[%s2] sm:$0x1]
        %v695 = vmul.f32 %v693, %v694
        %v696 = vld [vmem:[%s3] sm:$0x1]
        %v697 = vmul.f32 %v609, %v695
        %v698 = vsub.f32 %v696, %v697
        %v699 = vlaneseq
        %v700 = vshrl.u32 %v699, 7
        %v701 = vsub.s32 0, %v700
        %v702 = vrot.slane %v695, %v701
        %v703 = vmul.f32 %v341, %v702
        %v704 = vmul.f32 %v344, %v702
        %v706 = vlaneseq
        %v707 = vshrl.u32 %v706, 7
        %v708 = vsub.s32 0, %v707
        %v709 = vrot.slane %v698, %v708
        %v711 = vadd.f32 %v703, %v709
        %v712 = vadd.f32 %v704, %v709
        %v713 = vpack.c.bf16 %v712, %v711
        %v715 = vunpack.c.l.b16 %v713
        %v716 = vunpack.c.h.b16 %v713
        %v717 = vpack.c.b16 %v715, %v715
        %v718 = vpack.c.b16 %v716, %v716
        %721 = vst [vmem:[%s230] sm:$0xf] %v717
        %722 = vst [vmem:[%s230 + $0x4] sm:$0xf] %v718
        %s723 = sand.u32 %s119, 1
        %s724 = scalar_lea.sflag [#allocation4], %s723
        %s725 = sand.u32 %s119, 1
        %s726 = smul.addr %s725, 8
        %s727 = scalar_lea.vmem [#allocation7], %s726
        // Predicated region
        $region45: #{tpu_custom_call.1} parent=35 // pred_check
          %p728 = pneg %p129
        $region46: #{tpu_custom_call.1} parent=35 // pred_check_branch
          %730 = sbr.rel (%p728) target = $region48
        $region47: #{tpu_custom_call.1} parent=35 // pred_region
          %s731 = smul.u32 2, %s22
          %s733 = ssub.s32 128, 128
          %734 = vsyncadd %s724, %s733
          %s735 = smul.addr %s731, 64
          %s736 = scalar_lea.hbm %s4, %s735
          %s737 = sshll.u32 %s727, 4
          %s738 = int_to_ptr.vmem [resolvable:$true] %s737
          %743 = dma.vmem_to_hbm [thread:$0]  %s738, 128, %s736, %s724, 64, 64, 4
        $region48: #{tpu_custom_call.1} parent=35 // pred_fallthru
          _
      $region36: #{tpu_custom_call.1} parent=5 // pred_fallthru
        _
      %p744 = scmp.le.s32.totalorder 2, %s17
      // Predicated region
      $region49: #{tpu_custom_call.1} parent=5 // pred_check
        %p745 = pneg %p744
      $region50: #{tpu_custom_call.1} parent=5 // pred_check_branch
        %747 = sbr.rel (%p745) target = $region52
      $region51: #{tpu_custom_call.1} parent=5 // pred_region
        %s748 = ssub.s32 %s17, 2
        // Predicated region
        $region53: #{tpu_custom_call.1} parent=51 // pred_check
          %p749 = pneg %p135
        $region54: #{tpu_custom_call.1} parent=51 // pred_check_branch
          %751 = sbr.rel (%p749) target = $region56
        $region55: #{tpu_custom_call.1} parent=51 // pred_region
          %s752 = sand.u32 %s120, 1
          %s753 = scalar_lea.sflag [#allocation4], %s752
          %s754 = sand.u32 %s120, 1
          %s755 = smul.addr %s754, 8
          %s756 = scalar_lea.vmem [#allocation7], %s755
          %757 = dma.done %s753, 128
        $region56: #{tpu_custom_call.1} parent=51 // pred_fallthru
          _
      $region52: #{tpu_custom_call.1} parent=5 // pred_fallthru
        _
    $region6: #{tpu_custom_call.1} parent=1 // loop_footer
      %s21 = sadd.s32 1, %s17
    $region7: #{tpu_custom_call.1} parent=1 // loop_footer_branch
      %16 = sbr.rel target = $region3
    $region8: #{tpu_custom_call.1} parent=1 // loop_exit
      _
    %758 = vsyncpa [#allocation3], 1
    %s759 = scalar_lea.sflag [#allocation3], 1
    %760 = vsyncpa %s759, 1
    %761 = vsyncpa [#allocation6], 1
    %762 = vsyncpa [#allocation4], 1
    %s763 = scalar_lea.sflag [#allocation4], 1
    %764 = vsyncpa %s763, 1

</llo_original>
